<compile_context>
chip_gen: v7x
topology: tpu7x:2x2x1
jax: 0.10.0
libtpu: 0.0.40
codegen_flags: <defaults>
</compile_context>

<pallas_src>
import jax
import jax.numpy as jnp
from jax.experimental import pallas as pl
from jax.experimental.pallas import tpu as pltpu


def _round_up(n, m):
    return ((n + m - 1) // m) * m


def mine_kernel(xy_ref, w12_ref, b12_ref, w3_ref, b3_ref, o_ref):
    # Layer 1+2 fused:  h^T = relu(W12 @ xy^T + b12)        -> (size, tn)
    h = jnp.dot(w12_ref[...], xy_ref[...], preferred_element_type=jnp.float32)
    h = jnp.maximum(h + b12_ref[...], 0.0)
    # Layer 3:          out^T = w3 @ h^T + b3               -> (1, tn) lane-dense
    out = jnp.dot(w3_ref[...], h, preferred_element_type=jnp.float32) + b3_ref[...]
    o_ref[...] = out.astype(o_ref.dtype)


def prepare_params(p):
    """Build the kernel-layout parameter set ONCE per parameter set.

    Input `p` uses torch-native shapes:
      fc1_w (size, code), fc1_b (size,), fc2_w (size, outq), fc2_b (size,),
      fc3_w (1, size),    fc3_b (1,)
    """
    return {
        "w12": jnp.concatenate([p["fc1_w"], p["fc2_w"]], axis=1),   # (size, code+outq)
        "b12": (p["fc1_b"] + p["fc2_b"]).reshape(-1, 1),            # (size, 1)
        "w3":  p["fc3_w"],                                          # (1, size)
        "b3":  p["fc3_b"].reshape(1, 1),                            # (1, 1)
    }


def linear_mine_forward(x, y, kp, *, tn=8192):
    """LinearMine forward as a single batch-on-lanes Pallas kernel.

    x: (B, code_qubits) f32, y: (B, output_qubits) f32
    kp: prepared params from `prepare_params`
    returns: (B, 1) f32
    """
    B = x.shape[0]
    size, feat = kp["w12"].shape

    # Concatenate once and put the batch on the lane axis: (feat, B).
    xy_t = jnp.concatenate([x, y], axis=1).T

    # Lane tile: multiple of 128, as large as possible (amortize per-step cost).
    b_lane = _round_up(B, 128)
    tn_eff = min(tn, b_lane)
    # v7x: keep >= 2 grid steps for large batches so the "parallel" axis
    # actually shards across both TensorCores.
    if b_lane >= 256 and tn_eff >= b_lane:
        tn_eff = _round_up(b_lane // 2, 128)
    b_pad = _round_up(B, tn_eff)
    if b_pad != B:
        xy_t = jnp.pad(xy_t, ((0, 0), (0, b_pad - B)))

    grid = (b_pad // tn_eff,)

    resident = lambda shape: pl.BlockSpec(shape, lambda i: (0, 0))

    out_t = pl.pallas_call(
        mine_kernel,
        out_shape=jax.ShapeDtypeStruct((1, b_pad), jnp.float32),
        grid=grid,
        in_specs=[
            pl.BlockSpec((feat, tn_eff), lambda i: (0, i)),   # xy^T : streamed
            resident((size, feat)),                           # W12  : resident
            resident((size, 1)),                              # b1+b2: resident
            resident((1, size)),                              # w3   : resident
            resident((1, 1)),                                 # b3   : resident
        ],
        out_specs=pl.BlockSpec((1, tn_eff), lambda i: (0, i)),  # lane-dense store
        compiler_params=pltpu.CompilerParams(
            dimension_semantics=("parallel",),   # dual-TC sharding on v7x
        ),
    )(xy_t, kp["w12"], kp["b12"], kp["w3"], kp["b3"])

    # (1, B_pad) -> (B, 1)
    return out_t[0, :B, None]


def init_params(key, code_qubits, output_qubits, size=50):
    """Deterministic init matching torch.nn.Linear (weight stored as (out, in))."""
    k1, k2, k3, k4, k5, k6 = jax.random.split(key, 6)

    def uinit(k, shape, fan_in):
        bound = 1.0 / jnp.sqrt(float(fan_in))
        return jax.random.uniform(k, shape, jnp.float32, -bound, bound)

    return {
        "fc1_w": uinit(k1, (size, code_qubits), code_qubits),
        "fc1_b": uinit(k2, (size,), code_qubits),
        "fc2_w": uinit(k3, (size, output_qubits), output_qubits),
        "fc2_b": uinit(k4, (size,), output_qubits),
        "fc3_w": uinit(k5, (1, size), size),
        "fc3_b": uinit(k6, (1,), size),
    }


def reference_forward(x, y, p):
    h1 = jax.nn.relu(x @ p["fc1_w"].T + p["fc1_b"] + y @ p["fc2_w"].T + p["fc2_b"])
    return h1 @ p["fc3_w"].T + p["fc3_b"]


if __name__ == "__main__":
    key = jax.random.PRNGKey(0)
    code_qubits, output_qubits, size = 4, 3, 50

    kx, ky, kp_key = jax.random.split(key, 3)
    params = init_params(kp_key, code_qubits, output_qubits, size)
    kparams = prepare_params(params)   # built once per parameter set

    # Primary test: small batch, single tile.
    B = 8
    x = jax.random.normal(kx, (B, code_qubits), jnp.float32)
    y = jax.random.normal(ky, (B, output_qubits), jnp.float32)
    out = jax.block_until_ready(linear_mine_forward(x, y, kparams))
    ref = reference_forward(x, y, params)
    assert out.shape == (B, 1), out.shape
    assert jnp.allclose(out, ref, atol=1e-5, rtol=1e-5)

    # Secondary test: ragged batch + multi-tile grid (forced small lane tile).
    B2 = 300
    x2 = jax.random.normal(jax.random.PRNGKey(1), (B2, code_qubits), jnp.float32)
    y2 = jax.random.normal(jax.random.PRNGKey(2), (B2, output_qubits), jnp.float32)
    out2 = jax.block_until_ready(linear_mine_forward(x2, y2, kparams, tn=128))
    ref2 = reference_forward(x2, y2, params)
    assert out2.shape == (B2, 1), out2.shape
    assert jnp.allclose(out2, ref2, atol=1e-5, rtol=1e-5)

    # Tertiary test: batch large enough that the v7x ">=2 grid steps" cap kicks in.
    B3 = 256
    x3 = jax.random.normal(jax.random.PRNGKey(3), (B3, code_qubits), jnp.float32)
    y3 = jax.random.normal(jax.random.PRNGKey(4), (B3, output_qubits), jnp.float32)
    out3 = jax.block_until_ready(linear_mine_forward(x3, y3, kparams))
    ref3 = reference_forward(x3, y3, params)
    assert out3.shape == (B3, 1), out3.shape
    assert jnp.allclose(out3, ref3, atol=1e-5, rtol=1e-5)

    print("KERNEL_OK")
</pallas_src>

<mosaic_0001>
module attributes {stable_mosaic.version = 11 : i64} {
  func.func @mine_kernel(%arg0: i32, %arg1: memref<7x128xf32, #tpu.memory_space<vmem>>, %arg2: memref<50x7xf32, #tpu.memory_space<vmem>>, %arg3: memref<50x1xf32, #tpu.memory_space<vmem>>, %arg4: memref<1x50xf32, #tpu.memory_space<vmem>>, %arg5: memref<1x1xf32, #tpu.memory_space<vmem>>, %arg6: memref<1x128xf32, #tpu.memory_space<vmem>>) attributes {dimension_semantics = [#tpu.dimension_semantics<parallel>], iteration_bounds = array<i64: 1>, scalar_prefetch = 0 : i64, scratch_operands = 0 : i64, tpu.core_type = #tpu.core_type<tc>, window_params = [{transform_indices = @transform_0, window_bounds = array<i64: 7, 128>}, {pipeline_mode = #tpu.pipeline_mode<synchronous>, transform_indices = @transform_1, window_bounds = array<i64: 50, 7>}, {pipeline_mode = #tpu.pipeline_mode<synchronous>, transform_indices = @transform_2, window_bounds = array<i64: 50, 1>}, {pipeline_mode = #tpu.pipeline_mode<synchronous>, transform_indices = @transform_3, window_bounds = array<i64: 1, 50>}, {pipeline_mode = #tpu.pipeline_mode<synchronous>, transform_indices = @transform_4, window_bounds = array<i64: 1, 1>}, {transform_indices = @transform_5, window_bounds = array<i64: 1, 128>}]} {
    %c0 = arith.constant 0 : index
    %c0_0 = arith.constant 0 : index
    %0 = vector.load %arg2[%c0, %c0_0] : memref<50x7xf32, #tpu.memory_space<vmem>>, vector<50x7xf32>
    %c0_1 = arith.constant 0 : index
    %c0_2 = arith.constant 0 : index
    %1 = vector.load %arg1[%c0_1, %c0_2] : memref<7x128xf32, #tpu.memory_space<vmem>>, vector<7x128xf32>
    %cst = arith.constant dense<0.000000e+00> : vector<50x128xf32>
    %2 = tpu.matmul %0, %1, %cst {dimension_numbers = #tpu.dot_dimension_numbers<[1], [0], [0], [1], [0, 0, 1, 1], [], []>} : vector<50x7xf32>, vector<7x128xf32>, vector<50x128xf32> -> vector<50x128xf32>
    %c0_3 = arith.constant 0 : index
    %c0_4 = arith.constant 0 : index
    %3 = vector.load %arg3[%c0_3, %c0_4] : memref<50x1xf32, #tpu.memory_space<vmem>>, vector<50x1xf32>
    %4 = vector.broadcast %3 : vector<50x1xf32> to vector<50x128xf32>
    %5 = arith.addf %2, %4 : vector<50x128xf32>
    %cst_5 = arith.constant 0.000000e+00 : f32
    %6 = vector.broadcast %cst_5 : f32 to vector<50x128xf32>
    %7 = arith.maximumf %5, %6 : vector<50x128xf32>
    %c0_6 = arith.constant 0 : index
    %c0_7 = arith.constant 0 : index
    %8 = vector.load %arg4[%c0_6, %c0_7] : memref<1x50xf32, #tpu.memory_space<vmem>>, vector<1x50xf32>
    %cst_8 = arith.constant dense<0.000000e+00> : vector<1x128xf32>
    %9 = tpu.matmul %8, %7, %cst_8 {dimension_numbers = #tpu.dot_dimension_numbers<[1], [0], [0], [1], [0, 0, 1, 1], [], []>} : vector<1x50xf32>, vector<50x128xf32>, vector<1x128xf32> -> vector<1x128xf32>
    %c0_9 = arith.constant 0 : index
    %c0_10 = arith.constant 0 : index
    %10 = vector.load %arg5[%c0_9, %c0_10] : memref<1x1xf32, #tpu.memory_space<vmem>>, vector<1x1xf32>
    %11 = vector.broadcast %10 : vector<1x1xf32> to vector<1x128xf32>
    %12 = arith.addf %9, %11 : vector<1x128xf32>
    %c0_11 = arith.constant 0 : index
    %c0_12 = arith.constant 0 : index
    %13 = vector.load %arg6[%c0_11, %c0_12] : memref<1x128xf32, #tpu.memory_space<vmem>>, vector<1x128xf32>
    tpu.vector_store %arg6[%c0_11, %c0_12], %12 {strides = array<i32>} : memref<1x128xf32, #tpu.memory_space<vmem>>, vector<1x128xf32>,
    return
  }
  func.func @transform_0(%arg0: i32) -> (i32, i32) {
    %c0_i32 = arith.constant 0 : i32
    %c0_i32_0 = arith.constant 0 : i32
    return %c0_i32, %arg0 : i32, i32
  }
  func.func @transform_1(%arg0: i32) -> (i32, i32) {
    %c0_i32 = arith.constant 0 : i32
    %c0_i32_0 = arith.constant 0 : i32
    %c0_i32_1 = arith.constant 0 : i32
    return %c0_i32, %c0_i32_0 : i32, i32
  }
  func.func @transform_2(%arg0: i32) -> (i32, i32) {
    %c0_i32 = arith.constant 0 : i32
    %c0_i32_0 = arith.constant 0 : i32
    %c0_i32_1 = arith.constant 0 : i32
    return %c0_i32, %c0_i32_0 : i32, i32
  }
  func.func @transform_3(%arg0: i32) -> (i32, i32) {
    %c0_i32 = arith.constant 0 : i32
    %c0_i32_0 = arith.constant 0 : i32
    %c0_i32_1 = arith.constant 0 : i32
    return %c0_i32, %c0_i32_0 : i32, i32
  }
  func.func @transform_4(%arg0: i32) -> (i32, i32) {
    %c0_i32 = arith.constant 0 : i32
    %c0_i32_0 = arith.constant 0 : i32
    %c0_i32_1 = arith.constant 0 : i32
    return %c0_i32, %c0_i32_0 : i32, i32
  }
  func.func @transform_5(%arg0: i32) -> (i32, i32) {
    %c0_i32 = arith.constant 0 : i32
    %c0_i32_0 = arith.constant 0 : i32
    return %c0_i32, %arg0 : i32, i32
  }
}

</mosaic_0001>

<llo_original>
// kernel: tpu_custom_call.1
$region0: #{tpu_custom_call.1}
  #allocation0 [shape = 'u32[]', space=smem, size = 0x4, offset = 0x4, fixed_abs, tag = 'smem constant byte address 0x4 - core index']
  #allocation1 [shape = 'u32[144,128]{1,0:T(1,128)}', space=vmem, size = 0x12000, scoped, tag = 'internal scratch']
  #allocation2 [shape = 'f32[1,1]{1,0:T(1,128)S(1)}', space=vmem, size = 0x200, scoped, tag = 'scoped memory for tpu_custom_call.1']
  %s0 = inlined_call_operand.vmem [shape: f32[7,128], index: 0, kind: input, shape index: {}]
  %s1 = inlined_call_operand.vmem [shape: f32[50,7], index: 1, kind: input, shape index: {}]
  %s2 = inlined_call_operand.vmem [shape: f32[50,1], index: 2, kind: input, shape index: {}]
  %s3 = inlined_call_operand.vmem [shape: f32[1,50], index: 3, kind: input, shape index: {}]
  %s4 = inlined_call_operand.<no memory space> [shape: f32[1,1], index: 4, kind: input, shape index: {}]
  %s5 = inlined_call_operand.hbm [shape: f32[1,128], index: 5, kind: output, shape index: {}]
  %s6 = sld [smem:[#allocation0]]
  $region30: #{tpu_custom_call.1} parent=0
    _
  %s8 = ssub.s32 1, %s6
  %s9 = scalar_select 0, %s8, %s6
  %v10 = vstv %s4
  %11 = vst [vmem:[#allocation2] sm:$0x1] %v10
  $region1: #{tpu_custom_call.1} parent=0
    #allocation3 [shape = 'u8[512]{0}', space=vmem, size = 0x400, scoped, tag = 'output window, operand 0, single buffered']
    #allocation4 [shape = 's32[1]{0}', space=sflag, size = 0x4, scoped, tag = 'scoped memory for tpu_custom_call.1']
    %12 = vsyncpa [#allocation4], 0
    // Predicated region
    $region2: #{tpu_custom_call.1} parent=1 // pred_check
      _
    $region3: #{tpu_custom_call.1} parent=1 // pred_check_branch
      %14 = sbr.rel (0) target = $region5
    $region4: #{tpu_custom_call.1} parent=1 // pred_region
      _
    $region5: #{tpu_custom_call.1} parent=1 // pred_fallthru
      _
    // Predicated region
    $region6: #{tpu_custom_call.1} parent=1 // pred_check
      _
    $region7: #{tpu_custom_call.1} parent=1 // pred_check_branch
      %16 = sbr.rel (0) target = $region9
    $region8: #{tpu_custom_call.1} parent=1 // pred_region
      _
    $region9: #{tpu_custom_call.1} parent=1 // pred_fallthru
      _
    // Predicated region
    $region10: #{tpu_custom_call.1} parent=1 // pred_check
      _
    $region11: #{tpu_custom_call.1} parent=1 // pred_check_branch
      %18 = sbr.rel (0) target = $region13
    $region12: #{tpu_custom_call.1} parent=1 // pred_region
      _
    $region13: #{tpu_custom_call.1} parent=1 // pred_fallthru
      _
    // Predicated region
    $region14: #{tpu_custom_call.1} parent=1 // pred_check
      _
    $region15: #{tpu_custom_call.1} parent=1 // pred_check_branch
      %20 = sbr.rel (0) target = $region17
    $region16: #{tpu_custom_call.1} parent=1 // pred_region
      _
    $region17: #{tpu_custom_call.1} parent=1 // pred_fallthru
      _
    // Predicated region
    $region18: #{tpu_custom_call.1} parent=1 // pred_check
      _
    $region19: #{tpu_custom_call.1} parent=1 // pred_check_branch
      %22 = sbr.rel (0) target = $region21
    $region20: #{tpu_custom_call.1} parent=1 // pred_region
      _
    $region21: #{tpu_custom_call.1} parent=1 // pred_fallthru
      _
    %v23 = vld [vmem:[%s1] sm:$0xff]
    %v24 = vld [vmem:[%s1 + $0x8] sm:$0xff]
    %v25 = vld [vmem:[%s1 + $0x10] sm:$0xff]
    %v26 = vld [vmem:[%s1 + $0x18] sm:$0xff]
    %v27 = vld [vmem:[%s1 + $0x20] sm:$0xff]
    %v28 = vld [vmem:[%s1 + $0x28] sm:$0xff]
    %v29 = vld [vmem:[%s1 + $0x30] sm:$0x3]
    %v30 = vld [vmem:[%s0] sm:$0x7f]
    %v31 = vld [vmem:[%s2] sm:$0xff]
    %v32 = vld [vmem:[%s2 + $0x8] sm:$0xff]
    %v33 = vld [vmem:[%s2 + $0x10] sm:$0xff]
    %v34 = vld [vmem:[%s2 + $0x18] sm:$0xff]
    %v35 = vld [vmem:[%s2 + $0x20] sm:$0xff]
    %v36 = vld [vmem:[%s2 + $0x28] sm:$0xff]
    %v37 = vld [vmem:[%s2 + $0x30] sm:$0x3]
    %39 = vset.pattern.permute.xlu0 0
    %40 = vperm.xlu0 %39, %v31
    %v41 = vpop.permute.xlu0 %40
    %44 = vset.pattern.permute.xlu0 0
    %45 = vperm.xlu0 %44, %v32
    %v46 = vpop.permute.xlu0 %45
    %49 = vset.pattern.permute.xlu0 0
    %50 = vperm.xlu0 %49, %v33
    %v51 = vpop.permute.xlu0 %50
    %54 = vset.pattern.permute.xlu0 0
    %55 = vperm.xlu0 %54, %v34
    %v56 = vpop.permute.xlu0 %55
    %59 = vset.pattern.permute.xlu0 0
    %60 = vperm.xlu0 %59, %v35
    %v61 = vpop.permute.xlu0 %60
    %64 = vset.pattern.permute.xlu0 0
    %65 = vperm.xlu0 %64, %v36
    %v66 = vpop.permute.xlu0 %65
    %69 = vset.pattern.permute.xlu0 0
    %70 = vperm.xlu0 %69, %v37
    %v71 = vpop.permute.xlu0 %70
    %vm73 = vcmask 56320
    %v75 = vsel %vm73, %v23, 0
    %v78 = vsel %vm73, %v24, 0
    %v81 = vsel %vm73, %v25, 0
    %v84 = vsel %vm73, %v26, 0
    %v87 = vsel %vm73, %v27, 0
    %v90 = vsel %vm73, %v28, 0
    %v93 = vsel %vm73, %v29, 0
    %vm95 = vcmask 1046528
    %v97 = vsel %vm95, %v30, 0
    %99 = vmatprep.subr.mxu0 0.0
    %100 = vmatpush1.msra.mxu0 %v97
    %101 = vmatprep.subr.mxu0 0.0
    %102 = vmatpush1.msra.mxu0 0.0
    %103 = vmatprep.subr.mxu0 0.0
    %104 = vmatpush1.msra.mxu0 0.0
    %105 = vmatprep.subr.mxu0 0.0
    %106 = vmatpush1.msra.mxu0 0.0
    %107 = vmatprep.subr.mxu0 0.0
    %108 = vmatpush1.msra.mxu0 0.0
    %109 = vmatprep.subr.mxu0 0.0
    %110 = vmatpush1.msra.mxu0 0.0
    %111 = vmatprep.subr.mxu0 0.0
    %112 = vmatpush1.msra.mxu0 0.0
    %113 = vmatprep.subr.mxu0 0.0
    %114 = vmatpush1.msra.mxu0 0.0
    %115 = vmatprep.subr.mxu0 0.0
    %116 = vmatpush1.msra.mxu0 0.0
    %117 = vmatprep.subr.mxu0 0.0
    %118 = vmatpush1.msra.mxu0 0.0
    %119 = vmatprep.subr.mxu0 0.0
    %120 = vmatpush1.msra.mxu0 0.0
    %121 = vmatprep.subr.mxu0 0.0
    %122 = vmatpush1.msra.mxu0 0.0
    %123 = vmatprep.subr.mxu0 0.0
    %124 = vmatpush1.msra.mxu0 0.0
    %125 = vmatprep.subr.mxu0 0.0
    %126 = vmatpush1.msra.mxu0 0.0
    %127 = vmatprep.subr.mxu0 0.0
    %128 = vmatpush1.msra.mxu0 0.0
    %129 = vmatprep.subr.mxu0 0.0
    %130 = vmatpush1.msra.mxu0 0.0
    %131 = vmatprep.subr.mxu0 0.0
    %132 = vmatpush1.msra.mxu0 0.0
    %133 = vmatprep.subr.mxu0 0.0
    %134 = vmatpush1.msra.mxu0 0.0
    %135 = vmatprep.subr.mxu0 0.0
    %136 = vmatpush1.msra.mxu0 0.0
    %137 = vmatprep.subr.mxu0 0.0
    %138 = vmatpush1.msra.mxu0 0.0
    %139 = vmatprep.subr.mxu0 0.0
    %140 = vmatpush1.msra.mxu0 0.0
    %141 = vmatprep.subr.mxu0 0.0
    %142 = vmatpush1.msra.mxu0 0.0
    %143 = vmatprep.subr.mxu0 0.0
    %144 = vmatpush1.msra.mxu0 0.0
    %145 = vmatprep.subr.mxu0 0.0
    %146 = vmatpush1.msra.mxu0 0.0
    %147 = vmatprep.subr.mxu0 0.0
    %148 = vmatpush1.msra.mxu0 0.0
    %149 = vmatprep.subr.mxu0 0.0
    %150 = vmatpush1.msra.mxu0 0.0
    %151 = vmatprep.subr.mxu0 0.0
    %152 = vmatpush1.msra.mxu0 0.0
    %153 = vmatprep.subr.mxu0 0.0
    %154 = vmatpush1.msra.mxu0 0.0
    %155 = vmatprep.subr.mxu0 0.0
    %156 = vmatpush1.msra.mxu0 0.0
    %157 = vmatprep.subr.mxu0 0.0
    %158 = vmatpush1.msra.mxu0 0.0
    %159 = vmatprep.subr.mxu0 0.0
    %160 = vmatpush1.msra.mxu0 0.0
    %161 = vmatprep.subr.mxu0 0.0
    %162 = vmatpush1.msra.mxu0 0.0
    %163 = vmatprep.mubr.f32.mxu0 0.0
    %164 = vmatmul.mubr.f32.gmra.mrb[0].mxu0 %v75
    %v165 = vpop.f32.mrb[0].mxu0
    %v166 = vadd.f32 %v41, %v165
    %v167 = vpop.f32.mrb[0].mxu0
    %168 = vmatprep.mubr.f32.mxu0 0.0
    %169 = vmatmul.mubr.f32.gmra.mrb[0].mxu0 %v78
    %v170 = vpop.f32.mrb[0].mxu0
    %v171 = vadd.f32 %v46, %v170
    %v172 = vpop.f32.mrb[0].mxu0
    %173 = vmatprep.mubr.f32.mxu0 0.0
    %174 = vmatmul.mubr.f32.gmra.mrb[0].mxu0 %v81
    %v175 = vpop.f32.mrb[0].mxu0
    %v176 = vadd.f32 %v51, %v175
    %v177 = vpop.f32.mrb[0].mxu0
    %178 = vmatprep.mubr.f32.mxu0 0.0
    %179 = vmatmul.mubr.f32.gmra.mrb[0].mxu0 %v84
    %v180 = vpop.f32.mrb[0].mxu0
    %v181 = vadd.f32 %v56, %v180
    %v182 = vpop.f32.mrb[0].mxu0
    %183 = vmatprep.mubr.f32.mxu0 0.0
    %184 = vmatmul.mubr.f32.gmra.mrb[0].mxu0 %v87
    %v185 = vpop.f32.mrb[0].mxu0
    %v186 = vadd.f32 %v61, %v185
    %v187 = vpop.f32.mrb[0].mxu0
    %188 = vmatprep.mubr.f32.mxu0 0.0
    %189 = vmatmul.mubr.f32.gmra.mrb[0].mxu0 %v90
    %v190 = vpop.f32.mrb[0].mxu0
    %v191 = vadd.f32 %v66, %v190
    %v192 = vpop.f32.mrb[0].mxu0
    %193 = vmatprep.mubr.f32.mxu0 0.0
    %194 = vmatmul.mubr.f32.gmra.mrb[0].mxu0 %v93
    %v195 = vpop.f32.mrb[0].mxu0
    %v196 = vadd.f32 %v71, %v195
    %v197 = vpop.f32.mrb[0].mxu0
    %198 = vdwg.mxu0
    %v199 = vmax.f32 %v166, 0.0
    %v200 = vmax.f32 %v171, 0.0
    %v201 = vmax.f32 %v176, 0.0
    %v202 = vmax.f32 %v181, 0.0
    %v203 = vmax.f32 %v186, 0.0
    %v204 = vmax.f32 %v191, 0.0
    %v205 = vmax.f32 %v196, 0.0
    %v206 = vld [vmem:[%s3] sm:$0x1]
    %v207 = vld [vmem:[#allocation2] sm:$0x1]
    %209 = vset.pattern.permute.xlu0 0
    %210 = vperm.xlu0 %209, %v207
    %v211 = vpop.permute.xlu0 %210
    %v213 = vlaneseq
    %v214 = vshrl.u32 %v213, 7
    %v215 = vsub.s32 0, %v214
    %v216 = vrot.slane %v211, %v215
    %vm217 = vcmask 408576
    %v219 = vsel %vm217, %v206, 0
    %vm221 = vcmask 1041408
    %v223 = vsel %vm221, %v205, 0
    %225 = vmatprep.subr.mxu0 0.0
    %226 = vmatpush1.msra.mxu0 %v199
    %227 = vmatprep.subr.mxu0 0.0
    %228 = vmatpush1.msra.mxu0 %v200
    %229 = vmatprep.subr.mxu0 0.0
    %230 = vmatpush1.msra.mxu0 %v201
    %231 = vmatprep.subr.mxu0 0.0
    %232 = vmatpush1.msra.mxu0 %v202
    %233 = vmatprep.subr.mxu0 0.0
    %234 = vmatpush1.msra.mxu0 %v203
    %235 = vmatprep.subr.mxu0 0.0
    %236 = vmatpush1.msra.mxu0 %v204
    %237 = vmatprep.subr.mxu0 0.0
    %238 = vmatpush1.msra.mxu0 %v223
    %239 = vmatprep.subr.mxu0 0.0
    %240 = vmatpush1.msra.mxu0 0.0
    %241 = vmatprep.subr.mxu0 0.0
    %242 = vmatpush1.msra.mxu0 0.0
    %243 = vmatprep.subr.mxu0 0.0
    %244 = vmatpush1.msra.mxu0 0.0
    %245 = vmatprep.subr.mxu0 0.0
    %246 = vmatpush1.msra.mxu0 0.0
    %247 = vmatprep.subr.mxu0 0.0
    %248 = vmatpush1.msra.mxu0 0.0
    %249 = vmatprep.subr.mxu0 0.0
    %250 = vmatpush1.msra.mxu0 0.0
    %251 = vmatprep.subr.mxu0 0.0
    %252 = vmatpush1.msra.mxu0 0.0
    %253 = vmatprep.subr.mxu0 0.0
    %254 = vmatpush1.msra.mxu0 0.0
    %255 = vmatprep.subr.mxu0 0.0
    %256 = vmatpush1.msra.mxu0 0.0
    %257 = vmatprep.subr.mxu0 0.0
    %258 = vmatpush1.msra.mxu0 0.0
    %259 = vmatprep.subr.mxu0 0.0
    %260 = vmatpush1.msra.mxu0 0.0
    %261 = vmatprep.subr.mxu0 0.0
    %262 = vmatpush1.msra.mxu0 0.0
    %263 = vmatprep.subr.mxu0 0.0
    %264 = vmatpush1.msra.mxu0 0.0
    %265 = vmatprep.subr.mxu0 0.0
    %266 = vmatpush1.msra.mxu0 0.0
    %267 = vmatprep.subr.mxu0 0.0
    %268 = vmatpush1.msra.mxu0 0.0
    %269 = vmatprep.subr.mxu0 0.0
    %270 = vmatpush1.msra.mxu0 0.0
    %271 = vmatprep.subr.mxu0 0.0
    %272 = vmatpush1.msra.mxu0 0.0
    %273 = vmatprep.subr.mxu0 0.0
    %274 = vmatpush1.msra.mxu0 0.0
    %275 = vmatprep.subr.mxu0 0.0
    %276 = vmatpush1.msra.mxu0 0.0
    %277 = vmatprep.subr.mxu0 0.0
    %278 = vmatpush1.msra.mxu0 0.0
    %279 = vmatprep.subr.mxu0 0.0
    %280 = vmatpush1.msra.mxu0 0.0
    %281 = vmatprep.subr.mxu0 0.0
    %282 = vmatpush1.msra.mxu0 0.0
    %283 = vmatprep.subr.mxu0 0.0
    %284 = vmatpush1.msra.mxu0 0.0
    %285 = vmatprep.subr.mxu0 0.0
    %286 = vmatpush1.msra.mxu0 0.0
    %287 = vmatprep.subr.mxu0 0.0
    %288 = vmatpush1.msra.mxu0 0.0
    %289 = vmatprep.mubr.f32.mxu0 0.0
    %290 = vmatmul.mubr.f32.gmra.mrb[0].mxu0 %v219
    %v291 = vpop.f32.mrb[0].mxu0
    %v292 = vadd.f32 %v216, %v291
    %v293 = vpop.f32.mrb[0].mxu0
    %294 = vdwg.mxu0
    %295 = vst [vmem:[#allocation3] sm:$0x1] %v292
    // Predicated region
    $region22: #{tpu_custom_call.1} parent=1 // pred_check
      _
    $region23: #{tpu_custom_call.1} parent=1 // pred_check_branch
      %297 = sbr.rel (0) target = $region25
    $region24: #{tpu_custom_call.1} parent=1 // pred_region
      %s299 = ssub.s32 16, 16
      %300 = vsyncadd [#allocation4], %s299
      %s302 = sshll.u32 [#allocation3], 4
      %s303 = int_to_ptr.vmem [resolvable:$true] %s302
      %305 = dma.vmem_to_hbm [thread:$0]  %s303, 16, %s5, [#allocation4]
    $region25: #{tpu_custom_call.1} parent=1 // pred_fallthru
      _
    // Predicated region
    $region26: #{tpu_custom_call.1} parent=1 // pred_check
      _
    $region27: #{tpu_custom_call.1} parent=1 // pred_check_branch
      %307 = sbr.rel (0) target = $region29
    $region28: #{tpu_custom_call.1} parent=1 // pred_region
      %308 = dma.done [#allocation4], 16
    $region29: #{tpu_custom_call.1} parent=1 // pred_fallthru
      _
    %309 = vsyncpa [#allocation4], 1

</llo_original>
